<compile_context>
chip_gen: v7x
topology: tpu7x:2x2x1
jax: 0.10.0
libtpu: 0.0.40
codegen_flags: <defaults>
</compile_context>

<pallas_src>
import functools
import math

import jax
import jax.numpy as jnp
from jax.experimental import pallas as pl
from jax.experimental.pallas import tpu as pltpu


# ----------------------------- helpers ------------------------------------- #
def _round_up(x, m):
    return ((x + m - 1) // m) * m


def _vmem_limit_bytes():
    """Per-generation scoped-VMEM limit (don't cap v5e/v6e at 32 MiB)."""
    cap = 128 * 1024 * 1024
    try:
        cap = int(pltpu.get_tpu_info().vmem_capacity_bytes)
    except Exception:
        pass
    if cap <= 64 * 1024 * 1024:        # v7x-class: leave DMA headroom
        return 48 * 1024 * 1024
    return 96 * 1024 * 1024            # v5e / v6e: 128 MiB physical


def _pick_col_tile(n, target=512):
    """Largest multiple-of-128 divisor of n that is <= target (else full n)."""
    if n % 128 != 0:
        return n
    t = min(target, n)
    t -= t % 128
    while t >= 128:
        if n % t == 0:
            return t
        t -= 128
    return n


def _pick_seq_tile(n, target=256):
    """Largest multiple-of-8 divisor of n that is <= target (else full n)."""
    if n <= target:
        return n
    t = min(target, n)
    t -= t % 8
    while t >= 8:
        if n % t == 0:
            return t
        t -= 8
    return n


# ---------------------- fused QKV projection kernel ------------------------ #
def _qkv_kernel(x_ref, w_ref, b_ref, o_ref):
    # x: (tm, E) f32, w: (E, tn) compute-dtype (pre-transposed), b: (1, tn) f32
    x = x_ref[...].astype(w_ref.dtype)          # bf16 MXU operands, f32 accumulate
    y = jnp.dot(x, w_ref[...], preferred_element_type=jnp.float32)
    o_ref[...] = (y + b_ref[...]).astype(o_ref.dtype)


def fused_qkv_projection(x2d, w_t, b, *, out_dtype, vmem_limit):
    """y = x2d @ w_t + b, tiled/pipelined over rows and output columns."""
    M, E = x2d.shape
    n_out = w_t.shape[1]                         # 3E

    tile_m = min(512, _round_up(M, 8))
    tile_n = _pick_col_tile(n_out)
    Mp = _round_up(M, tile_m)
    xp = jnp.pad(x2d, ((0, Mp - M), (0, 0))) if Mp != M else x2d

    y = pl.pallas_call(
        _qkv_kernel,
        out_shape=jax.ShapeDtypeStruct((Mp, n_out), out_dtype),
        grid=(Mp // tile_m, n_out // tile_n),
        in_specs=[
            pl.BlockSpec((tile_m, E), lambda i, j: (i, 0)),
            pl.BlockSpec((E, tile_n), lambda i, j: (0, j)),
            pl.BlockSpec((1, tile_n), lambda i, j: (0, j)),
        ],
        out_specs=pl.BlockSpec((tile_m, tile_n), lambda i, j: (i, j)),
        compiler_params=pltpu.CompilerParams(
            dimension_semantics=("parallel", "parallel"),
            vmem_limit_bytes=vmem_limit,
        ),
    )(xp, w_t, b.reshape(1, n_out))
    return y[:M] if Mp != M else y


# ------------- flash attention + fused output-projection kernel ------------ #
def _flash_attn_proj_kernel(q_ref, k_ref, v_ref, wp_ref, bp_ref, o_ref,
                            m_ref, l_ref, acc_ref, *, num_heads, approx_recip):
    kv = pl.program_id(2)

    @pl.when(kv == 0)
    def _():
        m_ref[...] = jnp.full(m_ref.shape, -jnp.inf, m_ref.dtype)
        l_ref[...] = jnp.zeros(l_ref.shape, l_ref.dtype)
        acc_ref[...] = jnp.zeros(acc_ref.shape, acc_ref.dtype)

    q = q_ref[0]                                  # (H, tq, D)  (scale pre-folded)
    k = k_ref[0]                                  # (H, tk, D)
    v = v_ref[0]                                  # (H, tk, D)

    # All heads in a single batched MXU dot_general; f32 accumulation.
    s = jnp.einsum("hqd,hkd->hqk", q, k,
                   preferred_element_type=jnp.float32)        # (H, tq, tk)

    m_prev = m_ref[...]
    m_new = jnp.maximum(m_prev, jnp.max(s, axis=-1, keepdims=True))
    alpha = jnp.exp(m_prev - m_new)
    p = jnp.exp(s - m_new)                                    # f32 softmax math
    l_ref[...] = alpha * l_ref[...] + jnp.sum(p, axis=-1, keepdims=True)
    acc_ref[...] = alpha * acc_ref[...] + jnp.einsum(
        "hqk,hkd->hqd", p.astype(v.dtype), v,
        preferred_element_type=jnp.float32)
    m_ref[...] = m_new

    @pl.when(kv == pl.num_programs(2) - 1)
    def _():
        inv_l = pl.reciprocal(l_ref[...], approx=approx_recip)     # (H, tq, 1)
        tq = acc_ref.shape[1]
        e_out = wp_ref.shape[2]
        # Fused merge-heads + output projection: per-head (tq,D)@(D,E) partial
        # projections accumulated into one (tq,E) buffer (no lane concat,
        # no whole-(H,tq,D) live set).
        out = jnp.broadcast_to(bp_ref[...], (tq, e_out)).astype(jnp.float32)
        for h in range(num_heads):
            a_h = (acc_ref[h] * inv_l[h]).astype(wp_ref.dtype)     # (tq, D)
            out = out + jnp.dot(a_h, wp_ref[h],
                                preferred_element_type=jnp.float32)
        o_ref[0] = out.astype(o_ref.dtype)


def flash_attention_with_projection(q, k, v, wp_r, bp, *, vmem_limit,
                                    approx_recip):
    """q/k/v: (B, H, N, D); wp_r: (H, D, E); bp: (E,) -> (B, N, E) f32."""
    B, H, N, D = q.shape
    E = wp_r.shape[2]
    tq = _pick_seq_tile(N, 256)
    tk = _pick_seq_tile(N, 256)

    kernel = functools.partial(_flash_attn_proj_kernel, num_heads=H,
                               approx_recip=approx_recip)
    return pl.pallas_call(
        kernel,
        out_shape=jax.ShapeDtypeStruct((B, N, E), jnp.float32),
        grid=(B, N // tq, N // tk),
        in_specs=[
            pl.BlockSpec((1, H, tq, D), lambda b, qi, ki: (b, 0, qi, 0)),
            pl.BlockSpec((1, H, tk, D), lambda b, qi, ki: (b, 0, ki, 0)),
            pl.BlockSpec((1, H, tk, D), lambda b, qi, ki: (b, 0, ki, 0)),
            pl.BlockSpec((H, D, E), lambda b, qi, ki: (0, 0, 0)),
            pl.BlockSpec((1, E), lambda b, qi, ki: (0, 0)),
        ],
        out_specs=pl.BlockSpec((1, tq, E), lambda b, qi, ki: (b, qi, 0)),
        scratch_shapes=[
            pltpu.VMEM((H, tq, 1), jnp.float32),   # running max
            pltpu.VMEM((H, tq, 1), jnp.float32),   # running denom
            pltpu.VMEM((H, tq, D), jnp.float32),   # running output acc
        ],
        compiler_params=pltpu.CompilerParams(
            dimension_semantics=("parallel", "parallel", "arbitrary"),
            vmem_limit_bytes=vmem_limit,
        ),
    )(q, k, v, wp_r, bp.reshape(1, E))


# ------------------------------ full module -------------------------------- #
def multi_head_attention(x, params, num_heads, *, use_bf16=True):
    B, N, E = x.shape
    H = num_heads
    assert E % H == 0
    D = E // H
    scale = 1.0 / math.sqrt(float(E))            # module scales by sqrt(emb_size)
    compute_dtype = jnp.bfloat16 if use_bf16 else jnp.float32
    vmem_limit = _vmem_limit_bytes()

    # Host-side weight prep (one-time, constant-foldable):
    #  * softmax scale folded into the Q projection,
    #  * Q/K/V weights fused and pre-transposed to (E, 3E) so kernels do A@W,
    #  * Wp reshaped to (H, D, E) so merge-heads + projection fuse per head.
    w_qkv_t = jnp.concatenate(
        [params["wq"] * scale, params["wk"], params["wv"]], axis=0
    ).T.astype(compute_dtype)                                       # (E, 3E)
    b_qkv = jnp.concatenate(
        [params["bq"] * scale, params["bk"], params["bv"]], axis=0
    ).astype(jnp.float32)                                           # (3E,)
    wp_r = params["wp"].T.reshape(H, D, E).astype(compute_dtype)    # (H, D, E)
    bp = params["bp"].astype(jnp.float32)

    # Fused QKV projection; bf16 intermediate halves the HBM round trip.
    qkv = fused_qkv_projection(x.reshape(B * N, E), w_qkv_t, b_qkv,
                               out_dtype=compute_dtype, vmem_limit=vmem_limit)
    qkv = qkv.reshape(B, N, 3, H, D)
    q = jnp.transpose(qkv[:, :, 0], (0, 2, 1, 3))   # (B, H, N, D)
    k = jnp.transpose(qkv[:, :, 1], (0, 2, 1, 3))
    v = jnp.transpose(qkv[:, :, 2], (0, 2, 1, 3))

    return flash_attention_with_projection(q, k, v, wp_r, bp,
                                           vmem_limit=vmem_limit,
                                           approx_recip=use_bf16)


# ------------------------------ reference ---------------------------------- #
def multi_head_attention_ref(x, params, num_heads):
    B, N, E = x.shape
    D = E // num_heads

    def lin(y, w, b):
        return y @ w.T + b

    def split(y):
        return y.reshape(B, N, num_heads, D).transpose(0, 2, 1, 3)

    q = split(lin(x, params["wq"], params["bq"]))
    k = split(lin(x, params["wk"], params["bk"]))
    v = split(lin(x, params["wv"], params["bv"]))
    energy = jnp.einsum("bhqd,bhkd->bhqk", q, k)
    att = jax.nn.softmax(energy / math.sqrt(E), axis=-1)
    out = jnp.einsum("bhal,bhlv->bhav", att, v)
    out = out.transpose(0, 2, 1, 3).reshape(B, N, E)
    return lin(out, params["wp"], params["bp"])


# --------------------------------- main ------------------------------------ #
if __name__ == "__main__":
    B, N, E, H = 2, 8, 32, 4          # toy shapes (dropout=0.0 -> eval identity)

    key = jax.random.PRNGKey(0)
    ks = jax.random.split(key, 9)
    bound = 1.0 / math.sqrt(E)        # mimic nn.Linear's uniform init range

    params = {
        "wq": jax.random.uniform(ks[0], (E, E), jnp.float32, -bound, bound),
        "bq": jax.random.uniform(ks[1], (E,), jnp.float32, -bound, bound),
        "wk": jax.random.uniform(ks[2], (E, E), jnp.float32, -bound, bound),
        "bk": jax.random.uniform(ks[3], (E,), jnp.float32, -bound, bound),
        "wv": jax.random.uniform(ks[4], (E, E), jnp.float32, -bound, bound),
        "bv": jax.random.uniform(ks[5], (E,), jnp.float32, -bound, bound),
        "wp": jax.random.uniform(ks[6], (E, E), jnp.float32, -bound, bound),
        "bp": jax.random.uniform(ks[7], (E,), jnp.float32, -bound, bound),
    }
    x = jax.random.normal(ks[8], (B, N, E), jnp.float32)

    with jax.default_matmul_precision("highest"):
        ref = multi_head_attention_ref(x, params, num_heads=H)
    ref = jax.block_until_ready(ref)

    # f32 path: structural correctness at tight-ish tolerance.
    out_f32 = jax.block_until_ready(
        multi_head_attention(x, params, num_heads=H, use_bf16=False))
    assert out_f32.shape == (B, N, E)
    err32 = jnp.max(jnp.abs(out_f32 - ref))
    assert jnp.allclose(out_f32, ref, atol=2e-3, rtol=2e-3), (
        f"f32 path max abs err {err32}")

    # bf16-MXU path (bf16 operands, f32 accumulation, approx reciprocal):
    # expected-precision change -> looser tolerance.
    out_bf16 = jax.block_until_ready(
        multi_head_attention(x, params, num_heads=H, use_bf16=True))
    assert out_bf16.shape == (B, N, E)
    err16 = jnp.max(jnp.abs(out_bf16 - ref))
    assert jnp.allclose(out_bf16, ref, atol=2e-2, rtol=2e-2), (
        f"bf16 path max abs err {err16}")

    print("KERNEL_OK")
</pallas_src>

<mosaic_0001>
module attributes {stable_mosaic.version = 11 : i64} {
  func.func @_qkv_kernel(%arg0: i32, %arg1: i32, %arg2: memref<16x32xf32, #tpu.memory_space<vmem>>, %arg3: memref<32x96xf32, #tpu.memory_space<vmem>>, %arg4: memref<1x96xf32, #tpu.memory_space<vmem>>, %arg5: memref<16x96xf32, #tpu.memory_space<vmem>>) attributes {dimension_semantics = [#tpu.dimension_semantics<parallel>, #tpu.dimension_semantics<parallel>], iteration_bounds = array<i64: 1, 1>, scalar_prefetch = 0 : i64, scratch_operands = 0 : i64, tpu.core_type = #tpu.core_type<tc>, window_params = [{transform_indices = @transform_0, window_bounds = array<i64: 16, 32>}, {transform_indices = @transform_1, window_bounds = array<i64: 32, 96>}, {transform_indices = @transform_2, window_bounds = array<i64: 1, 96>}, {transform_indices = @transform_3, window_bounds = array<i64: 16, 96>}]} {
    %c0 = arith.constant 0 : index
    %c0_0 = arith.constant 0 : index
    %0 = vector.load %arg2[%c0, %c0_0] : memref<16x32xf32, #tpu.memory_space<vmem>>, vector<16x32xf32>
    %c0_1 = arith.constant 0 : index
    %c0_2 = arith.constant 0 : index
    %1 = vector.load %arg3[%c0_1, %c0_2] : memref<32x96xf32, #tpu.memory_space<vmem>>, vector<32x96xf32>
    %cst = arith.constant dense<0.000000e+00> : vector<16x96xf32>
    %2 = tpu.matmul %0, %1, %cst {dimension_numbers = #tpu.dot_dimension_numbers<[1], [0], [0], [1], [0, 0, 1, 1], [], []>} : vector<16x32xf32>, vector<32x96xf32>, vector<16x96xf32> -> vector<16x96xf32>
    %c0_3 = arith.constant 0 : index
    %c0_4 = arith.constant 0 : index
    %3 = vector.load %arg4[%c0_3, %c0_4] : memref<1x96xf32, #tpu.memory_space<vmem>>, vector<1x96xf32>
    %4 = vector.broadcast %3 : vector<1x96xf32> to vector<16x96xf32>
    %5 = arith.addf %2, %4 : vector<16x96xf32>
    %c0_5 = arith.constant 0 : index
    %c0_6 = arith.constant 0 : index
    %6 = vector.load %arg5[%c0_5, %c0_6] : memref<16x96xf32, #tpu.memory_space<vmem>>, vector<16x96xf32>
    tpu.vector_store %arg5[%c0_5, %c0_6], %5 {strides = array<i32>} : memref<16x96xf32, #tpu.memory_space<vmem>>, vector<16x96xf32>,
    return
  }
  func.func @transform_0(%arg0: i32, %arg1: i32) -> (i32, i32) {
    %c0_i32 = arith.constant 0 : i32
    %c0_i32_0 = arith.constant 0 : i32
    return %arg0, %c0_i32 : i32, i32
  }
  func.func @transform_1(%arg0: i32, %arg1: i32) -> (i32, i32) {
    %c0_i32 = arith.constant 0 : i32
    %c0_i32_0 = arith.constant 0 : i32
    return %c0_i32, %arg1 : i32, i32
  }
  func.func @transform_2(%arg0: i32, %arg1: i32) -> (i32, i32) {
    %c0_i32 = arith.constant 0 : i32
    %c0_i32_0 = arith.constant 0 : i32
    return %c0_i32, %arg1 : i32, i32
  }
  func.func @transform_3(%arg0: i32, %arg1: i32) -> (i32, i32) {
    %c0_i32 = arith.constant 0 : i32
    return %arg0, %arg1 : i32, i32
  }
}

</mosaic_0001>

<llo_original>
// kernel: tpu_custom_call.1
$region0: #{tpu_custom_call.1}
  #allocation0 [shape = 'u32[]', space=smem, size = 0x4, offset = 0x4, fixed_abs, tag = 'smem constant byte address 0x4 - core index']
  #allocation1 [shape = 'u32[144,128]{1,0:T(1,128)}', space=vmem, size = 0x12000, scoped, tag = 'internal scratch']
  %s0 = inlined_call_operand.hbm [shape: f32[16,32], index: 0, kind: input, shape index: {}]
  %s1 = inlined_call_operand.hbm [shape: f32[32,96], index: 1, kind: input, shape index: {}]
  %s2 = inlined_call_operand.hbm [shape: f32[1,96], index: 2, kind: input, shape index: {}]
  %s3 = inlined_call_operand.hbm [shape: f32[16,96], index: 3, kind: output, shape index: {}]
  %s4 = sld [smem:[#allocation0]]
  $region34: #{tpu_custom_call.1} parent=0
    _
  %s6 = ssub.s32 1, %s4
  %s7 = scalar_select 0, %s6, %s4
  $region1: #{tpu_custom_call.1} parent=0
    #allocation2 [shape = 'u8[8192]{0}', space=vmem, size = 0x2000, scoped, tag = 'input window, operand 0, single buffered']
    #allocation3 [shape = 's32[1]{0}', space=sflag, size = 0x4, scoped, tag = 'scoped memory for tpu_custom_call.1']
    #allocation4 [shape = 's32[1]{0}', space=sflag, size = 0x4, scoped, tag = 'scoped memory for tpu_custom_call.1']
    #allocation5 [shape = 'u8[16384]{0}', space=vmem, size = 0x4000, scoped, tag = 'input window, operand 1, single buffered']
    #allocation6 [shape = 's32[1]{0}', space=sflag, size = 0x4, scoped, tag = 'scoped memory for tpu_custom_call.1']
    #allocation7 [shape = 'u8[512]{0}', space=vmem, size = 0x400, scoped, tag = 'input window, operand 2, single buffered']
    #allocation8 [shape = 'u8[8192]{0}', space=vmem, size = 0x2000, scoped, tag = 'output window, operand 0, single buffered']
    %8 = vsyncpa [#allocation3], 0
    %9 = vsyncpa [#allocation6], 0
    %10 = vsyncpa [#allocation4], 0
    // Predicated region
    $region2: #{tpu_custom_call.1} parent=1 // pred_check
      _
    $region3: #{tpu_custom_call.1} parent=1 // pred_check_branch
      %12 = sbr.rel (0) target = $region5
    $region4: #{tpu_custom_call.1} parent=1 // pred_region
      %s14 = ssub.s32 256, 256
      %15 = vsyncadd [#allocation3], %s14
      %s16 = sshll.u32 [#allocation2], 4
      %s17 = int_to_ptr.vmem [resolvable:$true] %s16
      %22 = dma.hbm_to_vmem [thread:$0]  %s0, 256, %s17, [#allocation3], 128, 128, 8
    $region5: #{tpu_custom_call.1} parent=1 // pred_fallthru
      _
    // Predicated region
    $region6: #{tpu_custom_call.1} parent=1 // pred_check
      _
    $region7: #{tpu_custom_call.1} parent=1 // pred_check_branch
      %24 = sbr.rel (0) target = $region9
    $region8: #{tpu_custom_call.1} parent=1 // pred_region
      %s26 = ssub.s32 512, 512
      %27 = vsyncadd [#allocation6], %s26
      %s28 = sshll.u32 [#allocation5], 4
      %s29 = int_to_ptr.vmem [resolvable:$true] %s28
      %34 = dma.hbm_to_vmem [thread:$0]  %s1, 512, %s29, [#allocation6], 128, 128, 8
    $region9: #{tpu_custom_call.1} parent=1 // pred_fallthru
      _
    // Predicated region
    $region10: #{tpu_custom_call.1} parent=1 // pred_check
      _
    $region11: #{tpu_custom_call.1} parent=1 // pred_check_branch
      %36 = sbr.rel (0) target = $region13
    $region12: #{tpu_custom_call.1} parent=1 // pred_region
      %s38 = ssub.s32 16, 16
      %39 = vsyncadd [#allocation6], %s38
      %s41 = sshll.u32 [#allocation7], 4
      %s42 = int_to_ptr.vmem [resolvable:$true] %s41
      %44 = dma.hbm_to_vmem [thread:$0]  %s2, 16, %s42, [#allocation6]
    $region13: #{tpu_custom_call.1} parent=1 // pred_fallthru
      _
    // Predicated region
    $region14: #{tpu_custom_call.1} parent=1 // pred_check
      _
    $region15: #{tpu_custom_call.1} parent=1 // pred_check_branch
      %46 = sbr.rel (0) target = $region17
    $region16: #{tpu_custom_call.1} parent=1 // pred_region
      %47 = dma.done [#allocation3], 256
    $region17: #{tpu_custom_call.1} parent=1 // pred_fallthru
      _
    // Predicated region
    $region18: #{tpu_custom_call.1} parent=1 // pred_check
      _
    $region19: #{tpu_custom_call.1} parent=1 // pred_check_branch
      %49 = sbr.rel (0) target = $region21
    $region20: #{tpu_custom_call.1} parent=1 // pred_region
      %50 = dma.done [#allocation6], 512
    $region21: #{tpu_custom_call.1} parent=1 // pred_fallthru
      _
    // Predicated region
    $region22: #{tpu_custom_call.1} parent=1 // pred_check
      _
    $region23: #{tpu_custom_call.1} parent=1 // pred_check_branch
      %52 = sbr.rel (0) target = $region25
    $region24: #{tpu_custom_call.1} parent=1 // pred_region
      %53 = dma.done [#allocation6], 16
    $region25: #{tpu_custom_call.1} parent=1 // pred_fallthru
      _
    %v54 = vld [vmem:[#allocation2] sm:$0xff]
    %v55 = vld [vmem:[#allocation2 + $0x8] sm:$0xff]
    %v56 = vld [vmem:[#allocation5] sm:$0xff]
    %v57 = vld [vmem:[#allocation5 + $0x8] sm:$0xff]
    %v58 = vld [vmem:[#allocation5 + $0x10] sm:$0xff]
    %v59 = vld [vmem:[#allocation5 + $0x18] sm:$0xff]
    %v60 = vld [vmem:[#allocation7] sm:$0x1]
    %v62 = vlaneseq
    %v63 = vshrl.u32 %v62, 7
    %v64 = vsub.s32 0, %v63
    %v65 = vrot.slane %v60, %v64
    %vm67 = vcmask 261120
    %v69 = vsel %vm67, %v54, 0
    %v72 = vsel %vm67, %v55, 0
    %74 = vmatprep.subr.mxu0 0.0
    %75 = vmatpush1.msra.mxu0 %v56
    %76 = vmatprep.subr.mxu0 0.0
    %77 = vmatpush1.msra.mxu0 %v57
    %78 = vmatprep.subr.mxu0 0.0
    %79 = vmatpush1.msra.mxu0 %v58
    %80 = vmatprep.subr.mxu0 0.0
    %81 = vmatpush1.msra.mxu0 %v59
    %82 = vmatprep.subr.mxu0 0.0
    %83 = vmatpush1.msra.mxu0 0.0
    %84 = vmatprep.subr.mxu0 0.0
    %85 = vmatpush1.msra.mxu0 0.0
    %86 = vmatprep.subr.mxu0 0.0
    %87 = vmatpush1.msra.mxu0 0.0
    %88 = vmatprep.subr.mxu0 0.0
    %89 = vmatpush1.msra.mxu0 0.0
    %90 = vmatprep.subr.mxu0 0.0
    %91 = vmatpush1.msra.mxu0 0.0
    %92 = vmatprep.subr.mxu0 0.0
    %93 = vmatpush1.msra.mxu0 0.0
    %94 = vmatprep.subr.mxu0 0.0
    %95 = vmatpush1.msra.mxu0 0.0
    %96 = vmatprep.subr.mxu0 0.0
    %97 = vmatpush1.msra.mxu0 0.0
    %98 = vmatprep.subr.mxu0 0.0
    %99 = vmatpush1.msra.mxu0 0.0
    %100 = vmatprep.subr.mxu0 0.0
    %101 = vmatpush1.msra.mxu0 0.0
    %102 = vmatprep.subr.mxu0 0.0
    %103 = vmatpush1.msra.mxu0 0.0
    %104 = vmatprep.subr.mxu0 0.0
    %105 = vmatpush1.msra.mxu0 0.0
    %106 = vmatprep.subr.mxu0 0.0
    %107 = vmatpush1.msra.mxu0 0.0
    %108 = vmatprep.subr.mxu0 0.0
    %109 = vmatpush1.msra.mxu0 0.0
    %110 = vmatprep.subr.mxu0 0.0
    %111 = vmatpush1.msra.mxu0 0.0
    %112 = vmatprep.subr.mxu0 0.0
    %113 = vmatpush1.msra.mxu0 0.0
    %114 = vmatprep.subr.mxu0 0.0
    %115 = vmatpush1.msra.mxu0 0.0
    %116 = vmatprep.subr.mxu0 0.0
    %117 = vmatpush1.msra.mxu0 0.0
    %118 = vmatprep.subr.mxu0 0.0
    %119 = vmatpush1.msra.mxu0 0.0
    %120 = vmatprep.subr.mxu0 0.0
    %121 = vmatpush1.msra.mxu0 0.0
    %122 = vmatprep.subr.mxu0 0.0
    %123 = vmatpush1.msra.mxu0 0.0
    %124 = vmatprep.subr.mxu0 0.0
    %125 = vmatpush1.msra.mxu0 0.0
    %126 = vmatprep.subr.mxu0 0.0
    %127 = vmatpush1.msra.mxu0 0.0
    %128 = vmatprep.subr.mxu0 0.0
    %129 = vmatpush1.msra.mxu0 0.0
    %130 = vmatprep.subr.mxu0 0.0
    %131 = vmatpush1.msra.mxu0 0.0
    %132 = vmatprep.subr.mxu0 0.0
    %133 = vmatpush1.msra.mxu0 0.0
    %134 = vmatprep.subr.mxu0 0.0
    %135 = vmatpush1.msra.mxu0 0.0
    %136 = vmatprep.subr.mxu0 0.0
    %137 = vmatpush1.msra.mxu0 0.0
    %138 = vmatprep.mubr.f32.mxu0 0.0
    %139 = vmatmul.mubr.f32.gmra.mrb[0].mxu0 %v69
    %v140 = vpop.f32.mrb[0].mxu0
    %v141 = vadd.f32 %v65, %v140
    %v142 = vpop.f32.mrb[0].mxu0
    %143 = vmatprep.mubr.f32.mxu0 0.0
    %144 = vmatmul.mubr.f32.gmra.mrb[0].mxu0 %v72
    %v145 = vpop.f32.mrb[0].mxu0
    %v146 = vadd.f32 %v65, %v145
    %v147 = vpop.f32.mrb[0].mxu0
    %148 = vdwg.mxu0
    %vm149 = vcmask 785408
    %150 = vst.msk [vmem:[#allocation8] sm:$0xff] %vm149, %v141
    %151 = vst.msk [vmem:[#allocation8 + $0x8] sm:$0xff] %vm149, %v146
    // Predicated region
    $region26: #{tpu_custom_call.1} parent=1 // pred_check
      _
    $region27: #{tpu_custom_call.1} parent=1 // pred_check_branch
      %153 = sbr.rel (0) target = $region29
    $region28: #{tpu_custom_call.1} parent=1 // pred_region
      %s155 = ssub.s32 256, 256
      %156 = vsyncadd [#allocation4], %s155
      %s157 = sshll.u32 [#allocation8], 4
      %s158 = int_to_ptr.vmem [resolvable:$true] %s157
      %163 = dma.vmem_to_hbm [thread:$0]  %s158, 256, %s3, [#allocation4], 128, 128, 8
    $region29: #{tpu_custom_call.1} parent=1 // pred_fallthru
      _
    // Predicated region
    $region30: #{tpu_custom_call.1} parent=1 // pred_check
      _
    $region31: #{tpu_custom_call.1} parent=1 // pred_check_branch
      %165 = sbr.rel (0) target = $region33
    $region32: #{tpu_custom_call.1} parent=1 // pred_region
      %166 = dma.done [#allocation4], 256
    $region33: #{tpu_custom_call.1} parent=1 // pred_fallthru
      _
    %167 = vsyncpa [#allocation3], 1
    %168 = vsyncpa [#allocation6], 1
    %169 = vsyncpa [#allocation4], 1

</llo_original>
